<compile_context>
chip_gen: v7x
topology: tpu7x:2x2x1
jax: 0.10.0
libtpu: 0.0.40
codegen_flags: <defaults>
</compile_context>

<pallas_src>
import jax
import jax.numpy as jnp
from jax.experimental import pallas as pl
from jax.experimental.pallas import tpu as pltpu

VOCAB = 30522
KSIZE = 3                       # conv kernel size (padding = 1 each side)
NC_PAD = 128                    # lane-dense logits width inside the kernel
ROWS_TARGET = 4096              # flattened rows (batch_tile * padded_seq) per step
VMEM_LIMIT = 48 * 1024 * 1024   # <= v7x physical VMEM (64 MiB) with headroom


def _round_up(x, m):
    return ((x + m - 1) // m) * m


def _choose_batch_tile(B, P):
    """Batch tile: ~ROWS_TARGET rows/step, balanced multiple-of-8 tiles,
    and >= 2 grid steps for megacore whenever the batch can be split."""
    tb_cap = max(8, ((ROWS_TARGET // P) // 8) * 8)
    if B <= 8:
        return B                                   # tiny batch: single step
    if B <= tb_cap:
        return _round_up(-(-B // 2), 8)            # force >= 2 steps
    num_steps = -(-B // tb_cap)
    return _round_up(-(-B // num_steps), 8)        # balanced tiles


def _make_kernel(seq_len):
    """Fused conv1+relu+conv2+relu+mean+fc; seq_len is a static closure."""
    inv_s = 1.0 / float(seq_len)

    def kernel(x_ref, num_ref, w1_ref, b1_ref, w2_ref, b2_ref,
               wff_ref, wfn_ref, bf_ref, out_ref):
        TB, P, E = x_ref.shape            # batch tile, padded seq, embed dim
        C1 = w1_ref.shape[1]
        C2 = w2_ref.shape[1]
        R = TB * P                        # flattened row count (P % 8 == 0)

        # position-valid mask, built once at (1, P, 1) and broadcast.
        pos = jax.lax.broadcasted_iota(jnp.int32, (1, P, 1), 1)
        valid = jnp.logical_and(pos >= 1, pos <= seq_len)

        # pad slots were gathered from the dedicated zero embedding row, so x
        # is already zero there -> no input masking needed.
        x = x_ref[...].reshape(R, E)                       # (R,E) bf16
        bf16 = x.dtype

        # ---- conv1 (k=3, pad=1): taps fused into one K=3E matmul -----------
        # lhs row r = [x[r-1] | x[r] | x[r+1]]; wrap-around only touches pad
        # rows (zero) and pad output positions (masked post-ReLU).
        xf = x.astype(jnp.float32)
        xl = pltpu.roll(xf, 1, axis=0).astype(bf16)        # x[r-1]
        xr = pltpu.roll(xf, R - 1, axis=0).astype(bf16)    # x[r+1]
        lhs1 = jnp.concatenate([xl, x, xr], axis=1)        # (R, 3E) bf16
        acc1 = jnp.dot(lhs1, w1_ref[...], preferred_element_type=jnp.float32)
        h1f = jnp.maximum(acc1 + b1_ref[...], 0.0)         # (R, C1) f32
        h1f = jnp.where(valid, h1f.reshape(TB, P, C1), 0.0).reshape(R, C1)
        # TODO(synk): nn.Dropout(0.5) is identity in eval mode; training-mode
        # RNG dropout not implemented.

        # ---- conv2 (k=3, pad=1): same fused-tap scheme, K = 3*C1 ------------
        h1 = h1f.astype(bf16)
        h1l = pltpu.roll(h1f, 1, axis=0).astype(bf16)
        h1r = pltpu.roll(h1f, R - 1, axis=0).astype(bf16)
        lhs2 = jnp.concatenate([h1l, h1, h1r], axis=1)     # (R, 3*C1) bf16
        acc2 = jnp.dot(lhs2, w2_ref[...], preferred_element_type=jnp.float32)
        h2 = jnp.maximum(acc2 + b2_ref[...], 0.0)          # (R, C2) f32
        h2 = jnp.where(valid, h2.reshape(TB, P, C2), 0.0)

        # ---- mean over seq (1/S static scalar) + fc -------------------------
        feat = jnp.sum(h2, axis=1) * inv_s                 # (TB, C2) f32
        logits = (jnp.dot(feat, wff_ref[...], preferred_element_type=jnp.float32)
                  + jnp.dot(num_ref[...], wfn_ref[...],
                            preferred_element_type=jnp.float32)
                  + bf_ref[...])
        out_ref[...] = logits.astype(out_ref.dtype)

    return kernel


def textcnn_forward(input_ids, attention_mask, numerical_features, params):
    # attention_mask is accepted but unused (matches the PyTorch forward).
    del attention_mask
    B, S = input_ids.shape
    emb = params["embedding_bf16"]            # (VOCAB+1, E) bf16, row VOCAB = 0
    E = emb.shape[1]
    w1f, w2f = params["w1f"], params["w2f"]
    C1, C2 = w1f.shape[1], w2f.shape[1]
    F = numerical_features.shape[1]
    NC = params["bf_flat"].shape[0]
    assert NC <= NC_PAD

    # Padded seq length: >= 1 zero slot each side, rounded to sublane multiple.
    P = _round_up(S + 2, 8)                    # invariant: P >= S + 2
    TB = _choose_batch_tile(B, P)
    Bp = _round_up(B, TB)

    # Token ids laid out directly in padded coordinates; pad slots point at the
    # dedicated zero row (index VOCAB) -> no jnp.pad of embeddings, no in-kernel
    # masking of x.
    # TODO(synk): PyTorch's host-side raise on out-of-range input_ids has no
    # in-kernel equivalent; ids are assumed valid.  The embedding gather over
    # the 30522-row table stays in XLA (data-dependent gather).
    ids_p = jnp.pad(input_ids.astype(jnp.int32), ((0, Bp - B), (1, P - S - 1)),
                    constant_values=VOCAB)
    x = emb[ids_p]                                             # (Bp,P,E) bf16
    num = jnp.pad(numerical_features.astype(jnp.float32), ((0, Bp - B), (0, 0)))

    out = pl.pallas_call(
        _make_kernel(S),
        out_shape=jax.ShapeDtypeStruct((Bp, NC_PAD), jnp.float32),
        grid_spec=pltpu.PrefetchScalarGridSpec(
            num_scalar_prefetch=0,
            grid=(Bp // TB,),
            in_specs=[
                # activations: tiled over the batch
                pl.BlockSpec((TB, P, E), lambda i: (i, 0, 0)),
                pl.BlockSpec((TB, F), lambda i: (i, 0)),
                # weights / biases: constant index maps -> VMEM-resident
                pl.BlockSpec((KSIZE * E, C1), lambda i: (0, 0)),
                pl.BlockSpec((1, C1), lambda i: (0, 0)),
                pl.BlockSpec((KSIZE * C1, C2), lambda i: (0, 0)),
                pl.BlockSpec((1, C2), lambda i: (0, 0)),
                pl.BlockSpec((C2, NC_PAD), lambda i: (0, 0)),
                pl.BlockSpec((F, NC_PAD), lambda i: (0, 0)),
                pl.BlockSpec((1, NC_PAD), lambda i: (0, 0)),
            ],
            out_specs=pl.BlockSpec((TB, NC_PAD), lambda i: (i, 0)),
        ),
        compiler_params=pltpu.CompilerParams(
            dimension_semantics=("parallel",),     # megacore / 2-TC sharding
            vmem_limit_bytes=VMEM_LIMIT,
        ),
    )(x, num, w1f, params["b1"], w2f, params["b2"],
      params["wff"], params["wfn"], params["bfp"])

    return out[:B, :NC]


# ----------------------------- reference (pure JAX) -------------------------
def textcnn_reference(input_ids, numerical_features, params):
    emb = params["embedding"][input_ids]              # (B, S, E)
    x = jnp.transpose(emb, (0, 2, 1))                 # (B, E, S)  NCW like torch
    hp = jax.lax.Precision.HIGHEST
    y = jax.lax.conv_general_dilated(
        x, params["w1_oik"], window_strides=(1,), padding=[(1, 1)],
        dimension_numbers=("NCH", "OIH", "NCH"), precision=hp)
    y = jnp.maximum(y + params["b1_flat"].reshape(1, -1, 1), 0.0)
    y = jax.lax.conv_general_dilated(
        y, params["w2_oik"], window_strides=(1,), padding=[(1, 1)],
        dimension_numbers=("NCH", "OIH", "NCH"), precision=hp)
    y = jnp.maximum(y + params["b2_flat"].reshape(1, -1, 1), 0.0)
    feat = jnp.mean(y, axis=2)                        # (B, 64)
    cat = jnp.concatenate([feat, numerical_features], axis=1)
    return jnp.dot(cat, params["wf"], precision=hp) + params["bf_flat"]


# ----------------------------- parameter init -------------------------------
def init_params(key, embed_dim, num_classes, num_numerical_features):
    C1, C2 = 128, 64
    ks = jax.random.split(key, 7)

    def uni(k, shape, fan_in):
        b = 1.0 / jnp.sqrt(fan_in)
        return jax.random.uniform(k, shape, jnp.float32, -b, b)

    embedding = jax.random.normal(ks[0], (VOCAB, embed_dim), jnp.float32)
    w1_oik = uni(ks[1], (C1, embed_dim, KSIZE), embed_dim * KSIZE)   # torch (O,I,K)
    b1 = uni(ks[2], (C1,), embed_dim * KSIZE)
    w2_oik = uni(ks[3], (C2, C1, KSIZE), C1 * KSIZE)
    b2 = uni(ks[4], (C2,), C1 * KSIZE)
    fc_in = C2 + num_numerical_features
    fc_w = uni(ks[5], (num_classes, fc_in), fc_in)                   # torch (out,in)
    fc_b = uni(ks[6], (num_classes,), fc_in)

    # ---- kernel-side params, prepped ONCE (hoisted out of the call path) ----
    emb_bf16 = jnp.concatenate(
        [embedding.astype(jnp.bfloat16),
         jnp.zeros((1, embed_dim), jnp.bfloat16)], axis=0)   # zero row @ VOCAB
    # fused-tap conv weights: (K, Cin, Cout) -> (K*Cin, Cout)
    w1f = jnp.transpose(w1_oik, (2, 1, 0)).reshape(KSIZE * embed_dim, C1)
    w2f = jnp.transpose(w2_oik, (2, 1, 0)).reshape(KSIZE * C1, C2)
    wf = jnp.transpose(fc_w, (1, 0))                          # (in, out)
    pad_c = NC_PAD - num_classes
    wff = jnp.pad(wf[:C2], ((0, 0), (0, pad_c)))              # feature half
    wfn = jnp.pad(wf[C2:], ((0, 0), (0, pad_c)))              # numerical half
    bfp = jnp.pad(fc_b.reshape(1, num_classes), ((0, 0), (0, pad_c)))

    return {
        # kernel-side
        "embedding_bf16": emb_bf16,
        "w1f": w1f.astype(jnp.bfloat16), "b1": b1.reshape(1, C1),
        "w2f": w2f.astype(jnp.bfloat16), "b2": b2.reshape(1, C2),
        "wff": wff, "wfn": wfn, "bfp": bfp,
        # reference-side
        "embedding": embedding,
        "w1_oik": w1_oik, "w2_oik": w2_oik,
        "b1_flat": b1, "b2_flat": b2,
        "wf": wf, "bf_flat": fc_b,
    }


if __name__ == "__main__":
    B, S = 2, 16
    embed_dim, num_classes, num_numerical = 32, 4, 8

    key = jax.random.PRNGKey(0)
    kp, ki, kn = jax.random.split(key, 3)
    params = init_params(kp, embed_dim, num_classes, num_numerical)

    input_ids = jax.random.randint(ki, (B, S), 0, VOCAB, dtype=jnp.int32)
    attention_mask = jnp.ones((B, S), dtype=jnp.int32)
    numerical_features = jax.random.normal(kn, (B, num_numerical), jnp.float32)

    out = textcnn_forward(input_ids, attention_mask, numerical_features, params)
    out = jax.block_until_ready(out)

    ref = textcnn_reference(input_ids, numerical_features, params)

    assert out.shape == (B, num_classes)
    # bf16 MXU inputs with f32 accumulation vs the f32 HIGHEST reference.
    assert jnp.allclose(out, ref, rtol=2e-2, atol=2e-2), (out, ref)
    print("KERNEL_OK")
</pallas_src>

<mosaic_0001>
module attributes {stable_mosaic.version = 11 : i64} {
  func.func @kernel(%arg0: i32, %arg1: memref<2x24x32xbf16, #tpu.memory_space<vmem>>, %arg2: memref<2x8xf32, #tpu.memory_space<vmem>>, %arg3: memref<96x128xbf16, #tpu.memory_space<vmem>>, %arg4: memref<1x128xf32, #tpu.memory_space<vmem>>, %arg5: memref<384x64xbf16, #tpu.memory_space<vmem>>, %arg6: memref<1x64xf32, #tpu.memory_space<vmem>>, %arg7: memref<64x128xf32, #tpu.memory_space<vmem>>, %arg8: memref<8x128xf32, #tpu.memory_space<vmem>>, %arg9: memref<1x128xf32, #tpu.memory_space<vmem>>, %arg10: memref<2x128xf32, #tpu.memory_space<vmem>>) attributes {dimension_semantics = [#tpu.dimension_semantics<parallel>], iteration_bounds = array<i64: 1>, scalar_prefetch = 0 : i64, scratch_operands = 0 : i64, tpu.core_type = #tpu.core_type<tc>, window_params = [{transform_indices = @transform_0, window_bounds = array<i64: 2, 24, 32>}, {transform_indices = @transform_1, window_bounds = array<i64: 2, 8>}, {pipeline_mode = #tpu.pipeline_mode<synchronous>, transform_indices = @transform_2, window_bounds = array<i64: 96, 128>}, {pipeline_mode = #tpu.pipeline_mode<synchronous>, transform_indices = @transform_3, window_bounds = array<i64: 1, 128>}, {pipeline_mode = #tpu.pipeline_mode<synchronous>, transform_indices = @transform_4, window_bounds = array<i64: 384, 64>}, {pipeline_mode = #tpu.pipeline_mode<synchronous>, transform_indices = @transform_5, window_bounds = array<i64: 1, 64>}, {pipeline_mode = #tpu.pipeline_mode<synchronous>, transform_indices = @transform_6, window_bounds = array<i64: 64, 128>}, {pipeline_mode = #tpu.pipeline_mode<synchronous>, transform_indices = @transform_7, window_bounds = array<i64: 8, 128>}, {pipeline_mode = #tpu.pipeline_mode<synchronous>, transform_indices = @transform_8, window_bounds = array<i64: 1, 128>}, {transform_indices = @transform_9, window_bounds = array<i64: 2, 128>}]} {
    %0 = tpu.iota {dimensions = array<i32: 1>} : vector<1x24x1xi32>
    %c1_i32 = arith.constant 1 : i32
    %1 = vector.broadcast %c1_i32 : i32 to vector<1x24x1xi32>
    %2 = arith.cmpi sge, %0, %1 : vector<1x24x1xi32>
    %c16_i32 = arith.constant 16 : i32
    %3 = vector.broadcast %c16_i32 : i32 to vector<1x24x1xi32>
    %4 = arith.cmpi sle, %0, %3 : vector<1x24x1xi32>
    %5 = arith.andi %2, %4 : vector<1x24x1xi1>
    %c0 = arith.constant 0 : index
    %c0_0 = arith.constant 0 : index
    %c0_1 = arith.constant 0 : index
    %6 = vector.load %arg1[%c0, %c0_0, %c0_1] : memref<2x24x32xbf16, #tpu.memory_space<vmem>>, vector<2x24x32xbf16>
    %7 = vector.shape_cast %6 : vector<2x24x32xbf16> to vector<48x32xbf16>
    %8 = arith.extf %7 : vector<48x32xbf16> to vector<48x32xf32>
    %c1_i32_2 = arith.constant 1 : i32
    %9 = tpu.dynamic_rotate %8 by %c1_i32_2 dim 0 : vector<48x32xf32>, i32 -> vector<48x32xf32>
    %10 = arith.truncf %9 : vector<48x32xf32> to vector<48x32xbf16>
    %c47_i32 = arith.constant 47 : i32
    %11 = tpu.dynamic_rotate %8 by %c47_i32 dim 0 : vector<48x32xf32>, i32 -> vector<48x32xf32>
    %12 = arith.truncf %11 : vector<48x32xf32> to vector<48x32xbf16>
    %13 = tpu.concatenate %10, %7, %12 in 1 : vector<48x32xbf16>, vector<48x32xbf16>, vector<48x32xbf16> -> vector<48x96xbf16>
    %c0_3 = arith.constant 0 : index
    %c0_4 = arith.constant 0 : index
    %14 = vector.load %arg3[%c0_3, %c0_4] : memref<96x128xbf16, #tpu.memory_space<vmem>>, vector<96x128xbf16>
    %cst = arith.constant dense<0.000000e+00> : vector<48x128xf32>
    %15 = tpu.matmul %13, %14, %cst {dimension_numbers = #tpu.dot_dimension_numbers<[1], [0], [0], [1], [0, 0, 1, 1], [], []>} : vector<48x96xbf16>, vector<96x128xbf16>, vector<48x128xf32> -> vector<48x128xf32>
    %c0_5 = arith.constant 0 : index
    %c0_6 = arith.constant 0 : index
    %16 = vector.load %arg4[%c0_5, %c0_6] : memref<1x128xf32, #tpu.memory_space<vmem>>, vector<1x128xf32>
    %17 = vector.broadcast %16 : vector<1x128xf32> to vector<48x128xf32>
    %18 = arith.addf %15, %17 : vector<48x128xf32>
    %cst_7 = arith.constant 0.000000e+00 : f32
    %19 = vector.broadcast %cst_7 : f32 to vector<48x128xf32>
    %20 = arith.maximumf %18, %19 : vector<48x128xf32>
    %21 = vector.shape_cast %20 : vector<48x128xf32> to vector<2x24x128xf32>
    %cst_8 = arith.constant 0.000000e+00 : f32
    %22 = vector.shape_cast %5 : vector<1x24x1xi1> to vector<1x24x1xi1>
    %23 = vector.broadcast %22 : vector<1x24x1xi1> to vector<2x24x128xi1>
    %24 = vector.broadcast %cst_8 : f32 to vector<2x24x128xf32>
    %25 = arith.select %23, %21, %24 : vector<2x24x128xi1>, vector<2x24x128xf32>
    %26 = vector.shape_cast %25 : vector<2x24x128xf32> to vector<48x128xf32>
    %27 = arith.truncf %26 : vector<48x128xf32> to vector<48x128xbf16>
    %c1_i32_9 = arith.constant 1 : i32
    %28 = tpu.dynamic_rotate %26 by %c1_i32_9 dim 0 : vector<48x128xf32>, i32 -> vector<48x128xf32>
    %29 = arith.truncf %28 : vector<48x128xf32> to vector<48x128xbf16>
    %c47_i32_10 = arith.constant 47 : i32
    %30 = tpu.dynamic_rotate %26 by %c47_i32_10 dim 0 : vector<48x128xf32>, i32 -> vector<48x128xf32>
    %31 = arith.truncf %30 : vector<48x128xf32> to vector<48x128xbf16>
    %32 = tpu.concatenate %29, %27, %31 in 1 : vector<48x128xbf16>, vector<48x128xbf16>, vector<48x128xbf16> -> vector<48x384xbf16>
    %c0_11 = arith.constant 0 : index
    %c0_12 = arith.constant 0 : index
    %33 = vector.load %arg5[%c0_11, %c0_12] : memref<384x64xbf16, #tpu.memory_space<vmem>>, vector<384x64xbf16>
    %cst_13 = arith.constant dense<0.000000e+00> : vector<48x64xf32>
    %34 = tpu.matmul %32, %33, %cst_13 {dimension_numbers = #tpu.dot_dimension_numbers<[1], [0], [0], [1], [0, 0, 1, 1], [], []>} : vector<48x384xbf16>, vector<384x64xbf16>, vector<48x64xf32> -> vector<48x64xf32>
    %c0_14 = arith.constant 0 : index
    %c0_15 = arith.constant 0 : index
    %35 = vector.load %arg6[%c0_14, %c0_15] : memref<1x64xf32, #tpu.memory_space<vmem>>, vector<1x64xf32>
    %36 = vector.broadcast %35 : vector<1x64xf32> to vector<48x64xf32>
    %37 = arith.addf %34, %36 : vector<48x64xf32>
    %cst_16 = arith.constant 0.000000e+00 : f32
    %38 = vector.broadcast %cst_16 : f32 to vector<48x64xf32>
    %39 = arith.maximumf %37, %38 : vector<48x64xf32>
    %40 = vector.shape_cast %39 : vector<48x64xf32> to vector<2x24x64xf32>
    %cst_17 = arith.constant 0.000000e+00 : f32
    %41 = vector.shape_cast %5 : vector<1x24x1xi1> to vector<1x24x1xi1>
    %42 = vector.broadcast %41 : vector<1x24x1xi1> to vector<2x24x64xi1>
    %43 = vector.broadcast %cst_17 : f32 to vector<2x24x64xf32>
    %44 = arith.select %42, %40, %43 : vector<2x24x64xi1>, vector<2x24x64xf32>
    %cst_18 = arith.constant dense<0.000000e+00> : vector<2x64xf32>
    %45 = vector.multi_reduction <add>, %44, %cst_18 [1] : vector<2x24x64xf32> to vector<2x64xf32>
    %cst_19 = arith.constant 6.250000e-02 : f32
    %46 = vector.broadcast %cst_19 : f32 to vector<2x64xf32>
    %47 = arith.mulf %45, %46 : vector<2x64xf32>
    %c0_20 = arith.constant 0 : index
    %c0_21 = arith.constant 0 : index
    %48 = vector.load %arg7[%c0_20, %c0_21] : memref<64x128xf32, #tpu.memory_space<vmem>>, vector<64x128xf32>
    %cst_22 = arith.constant dense<0.000000e+00> : vector<2x128xf32>
    %49 = tpu.matmul %47, %48, %cst_22 {dimension_numbers = #tpu.dot_dimension_numbers<[1], [0], [0], [1], [0, 0, 1, 1], [], []>} : vector<2x64xf32>, vector<64x128xf32>, vector<2x128xf32> -> vector<2x128xf32>
    %c0_23 = arith.constant 0 : index
    %c0_24 = arith.constant 0 : index
    %50 = vector.load %arg2[%c0_23, %c0_24] : memref<2x8xf32, #tpu.memory_space<vmem>>, vector<2x8xf32>
    %c0_25 = arith.constant 0 : index
    %c0_26 = arith.constant 0 : index
    %51 = vector.load %arg8[%c0_25, %c0_26] : memref<8x128xf32, #tpu.memory_space<vmem>>, vector<8x128xf32>
    %cst_27 = arith.constant dense<0.000000e+00> : vector<2x128xf32>
    %52 = tpu.matmul %50, %51, %cst_27 {dimension_numbers = #tpu.dot_dimension_numbers<[1], [0], [0], [1], [0, 0, 1, 1], [], []>} : vector<2x8xf32>, vector<8x128xf32>, vector<2x128xf32> -> vector<2x128xf32>
    %53 = arith.addf %49, %52 : vector<2x128xf32>
    %c0_28 = arith.constant 0 : index
    %c0_29 = arith.constant 0 : index
    %54 = vector.load %arg9[%c0_28, %c0_29] : memref<1x128xf32, #tpu.memory_space<vmem>>, vector<1x128xf32>
    %55 = vector.broadcast %54 : vector<1x128xf32> to vector<2x128xf32>
    %56 = arith.addf %53, %55 : vector<2x128xf32>
    %c0_30 = arith.constant 0 : index
    %c0_31 = arith.constant 0 : index
    %57 = vector.load %arg10[%c0_30, %c0_31] : memref<2x128xf32, #tpu.memory_space<vmem>>, vector<2x128xf32>
    tpu.vector_store %arg10[%c0_30, %c0_31], %56 {strides = array<i32>} : memref<2x128xf32, #tpu.memory_space<vmem>>, vector<2x128xf32>,
    return
  }
  func.func @transform_0(%arg0: i32) -> (i32, i32, i32) {
    %c0_i32 = arith.constant 0 : i32
    %c0_i32_0 = arith.constant 0 : i32
    %c0_i32_1 = arith.constant 0 : i32
    return %arg0, %c0_i32, %c0_i32_0 : i32, i32, i32
  }
  func.func @transform_1(%arg0: i32) -> (i32, i32) {
    %c0_i32 = arith.constant 0 : i32
    %c0_i32_0 = arith.constant 0 : i32
    return %arg0, %c0_i32 : i32, i32
  }
  func.func @transform_2(%arg0: i32) -> (i32, i32) {
    %c0_i32 = arith.constant 0 : i32
    %c0_i32_0 = arith.constant 0 : i32
    %c0_i32_1 = arith.constant 0 : i32
    return %c0_i32, %c0_i32_0 : i32, i32
  }
  func.func @transform_3(%arg0: i32) -> (i32, i32) {
    %c0_i32 = arith.constant 0 : i32
    %c0_i32_0 = arith.constant 0 : i32
    %c0_i32_1 = arith.constant 0 : i32
    return %c0_i32, %c0_i32_0 : i32, i32
  }
  func.func @transform_4(%arg0: i32) -> (i32, i32) {
    %c0_i32 = arith.constant 0 : i32
    %c0_i32_0 = arith.constant 0 : i32
    %c0_i32_1 = arith.constant 0 : i32
    return %c0_i32, %c0_i32_0 : i32, i32
  }
  func.func @transform_5(%arg0: i32) -> (i32, i32) {
    %c0_i32 = arith.constant 0 : i32
    %c0_i32_0 = arith.constant 0 : i32
    %c0_i32_1 = arith.constant 0 : i32
    return %c0_i32, %c0_i32_0 : i32, i32
  }
  func.func @transform_6(%arg0: i32) -> (i32, i32) {
    %c0_i32 = arith.constant 0 : i32
    %c0_i32_0 = arith.constant 0 : i32
    %c0_i32_1 = arith.constant 0 : i32
    return %c0_i32, %c0_i32_0 : i32, i32
  }
  func.func @transform_7(%arg0: i32) -> (i32, i32) {
    %c0_i32 = arith.constant 0 : i32
    %c0_i32_0 = arith.constant 0 : i32
    %c0_i32_1 = arith.constant 0 : i32
    return %c0_i32, %c0_i32_0 : i32, i32
  }
  func.func @transform_8(%arg0: i32) -> (i32, i32) {
    %c0_i32 = arith.constant 0 : i32
    %c0_i32_0 = arith.constant 0 : i32
    %c0_i32_1 = arith.constant 0 : i32
    return %c0_i32, %c0_i32_0 : i32, i32
  }
  func.func @transform_9(%arg0: i32) -> (i32, i32) {
    %c0_i32 = arith.constant 0 : i32
    %c0_i32_0 = arith.constant 0 : i32
    return %arg0, %c0_i32 : i32, i32
  }
}

</mosaic_0001>

<llo_original>
// kernel: tpu_custom_call.1
$region0: #{tpu_custom_call.1}
  #allocation0 [shape = 'u32[]', space=smem, size = 0x4, offset = 0x4, fixed_abs, tag = 'smem constant byte address 0x4 - core index']
  #allocation1 [shape = 'u32[144,128]{1,0:T(1,128)}', space=vmem, size = 0x12000, scoped, tag = 'internal scratch']
  %s0 = inlined_call_operand.vmem [shape: bf16[2,24,32], index: 0, kind: input, shape index: {}]
  %s1 = inlined_call_operand.vmem [shape: f32[2,8], index: 1, kind: input, shape index: {}]
  %s2 = inlined_call_operand.vmem [shape: bf16[96,128], index: 2, kind: input, shape index: {}]
  %s3 = inlined_call_operand.vmem [shape: f32[1,128], index: 3, kind: input, shape index: {}]
  %s4 = inlined_call_operand.vmem [shape: bf16[384,64], index: 4, kind: input, shape index: {}]
  %s5 = inlined_call_operand.vmem [shape: f32[1,64], index: 5, kind: input, shape index: {}]
  %s6 = inlined_call_operand.vmem [shape: f32[64,128], index: 6, kind: input, shape index: {}]
  %s7 = inlined_call_operand.vmem [shape: f32[8,128], index: 7, kind: input, shape index: {}]
  %s8 = inlined_call_operand.vmem [shape: f32[1,128], index: 8, kind: input, shape index: {}]
  %s9 = inlined_call_operand.hbm [shape: f32[2,128], index: 9, kind: output, shape index: {}]
  %s10 = sld [smem:[#allocation0]]
  $region46: #{tpu_custom_call.1} parent=0
    _
  %s12 = ssub.s32 1, %s10
  %s13 = scalar_select 0, %s12, %s10
  $region1: #{tpu_custom_call.1} parent=0
    #allocation2 [shape = 'u8[1024]{0}', space=vmem, size = 0x400, scoped, tag = 'output window, operand 0, single buffered']
    #allocation3 [shape = 's32[1]{0}', space=sflag, size = 0x4, scoped, tag = 'scoped memory for tpu_custom_call.1']
    %14 = vsyncpa [#allocation3], 0
    // Predicated region
    $region2: #{tpu_custom_call.1} parent=1 // pred_check
      _
    $region3: #{tpu_custom_call.1} parent=1 // pred_check_branch
      %16 = sbr.rel (0) target = $region5
    $region4: #{tpu_custom_call.1} parent=1 // pred_region
      _
    $region5: #{tpu_custom_call.1} parent=1 // pred_fallthru
      _
    // Predicated region
    $region6: #{tpu_custom_call.1} parent=1 // pred_check
      _
    $region7: #{tpu_custom_call.1} parent=1 // pred_check_branch
      %18 = sbr.rel (0) target = $region9
    $region8: #{tpu_custom_call.1} parent=1 // pred_region
      _
    $region9: #{tpu_custom_call.1} parent=1 // pred_fallthru
      _
    // Predicated region
    $region10: #{tpu_custom_call.1} parent=1 // pred_check
      _
    $region11: #{tpu_custom_call.1} parent=1 // pred_check_branch
      %20 = sbr.rel (0) target = $region13
    $region12: #{tpu_custom_call.1} parent=1 // pred_region
      _
    $region13: #{tpu_custom_call.1} parent=1 // pred_fallthru
      _
    // Predicated region
    $region14: #{tpu_custom_call.1} parent=1 // pred_check
      _
    $region15: #{tpu_custom_call.1} parent=1 // pred_check_branch
      %22 = sbr.rel (0) target = $region17
    $region16: #{tpu_custom_call.1} parent=1 // pred_region
      _
    $region17: #{tpu_custom_call.1} parent=1 // pred_fallthru
      _
    // Predicated region
    $region18: #{tpu_custom_call.1} parent=1 // pred_check
      _
    $region19: #{tpu_custom_call.1} parent=1 // pred_check_branch
      %24 = sbr.rel (0) target = $region21
    $region20: #{tpu_custom_call.1} parent=1 // pred_region
      _
    $region21: #{tpu_custom_call.1} parent=1 // pred_fallthru
      _
    // Predicated region
    $region22: #{tpu_custom_call.1} parent=1 // pred_check
      _
    $region23: #{tpu_custom_call.1} parent=1 // pred_check_branch
      %26 = sbr.rel (0) target = $region25
    $region24: #{tpu_custom_call.1} parent=1 // pred_region
      _
    $region25: #{tpu_custom_call.1} parent=1 // pred_fallthru
      _
    // Predicated region
    $region26: #{tpu_custom_call.1} parent=1 // pred_check
      _
    $region27: #{tpu_custom_call.1} parent=1 // pred_check_branch
      %28 = sbr.rel (0) target = $region29
    $region28: #{tpu_custom_call.1} parent=1 // pred_region
      _
    $region29: #{tpu_custom_call.1} parent=1 // pred_fallthru
      _
    // Predicated region
    $region30: #{tpu_custom_call.1} parent=1 // pred_check
      _
    $region31: #{tpu_custom_call.1} parent=1 // pred_check_branch
      %30 = sbr.rel (0) target = $region33
    $region32: #{tpu_custom_call.1} parent=1 // pred_region
      _
    $region33: #{tpu_custom_call.1} parent=1 // pred_fallthru
      _
    // Predicated region
    $region34: #{tpu_custom_call.1} parent=1 // pred_check
      _
    $region35: #{tpu_custom_call.1} parent=1 // pred_check_branch
      %32 = sbr.rel (0) target = $region37
    $region36: #{tpu_custom_call.1} parent=1 // pred_region
      _
    $region37: #{tpu_custom_call.1} parent=1 // pred_fallthru
      _
    %v34 = vlaneseq
    %v35 = vshrl.u32 %v34, 7
    %v36 = vadd.s32 %v35, 8
    %v37 = vadd.s32 %v35, 16
    %vm38 = vcmp.ge.s32.totalorder %v35, 1
    %vm39 = vcmp.ge.s32.totalorder %v36, 1
    %vm40 = vcmp.ge.s32.totalorder %v37, 1
    %vm41 = vcmp.le.s32.totalorder %v35, 16
    %vm42 = vcmp.le.s32.totalorder %v36, 16
    %vm43 = vcmp.le.s32.totalorder %v37, 16
    %vm44 = vmand %vm38, %vm41
    %vm45 = vmand %vm39, %vm42
    %vm46 = vmand %vm40, %vm43
    %v47 = vld [vmem:[%s0] sm:$0xf]
    %v48 = vld [vmem:[%s0 + $0x4] sm:$0xf]
    %v49 = vld [vmem:[%s0 + $0x8] sm:$0xf]
    %v50 = vld [vmem:[%s0 + $0xc] sm:$0xf]
    %v51 = vld [vmem:[%s0 + $0x10] sm:$0xf]
    %v52 = vld [vmem:[%s0 + $0x14] sm:$0xf]
    %v53 = vunpack.c.l.bf16 %v47
    %v54 = vunpack.c.l.bf16 %v48
    %v55 = vunpack.c.l.bf16 %v49
    %v56 = vunpack.c.l.bf16 %v50
    %v57 = vunpack.c.l.bf16 %v51
    %v58 = vunpack.c.l.bf16 %v52
    %v59 = vrot.slane %v53, 7
    %v60 = vrot.slane %v54, 7
    %v61 = vrot.slane %v55, 7
    %v62 = vrot.slane %v56, 7
    %v63 = vrot.slane %v57, 7
    %v64 = vrot.slane %v58, 7
    %vm65 = vcmp.lt.s32.totalorder %v35, 1
    %v66 = vsel %vm65, %v63, %v64
    %v67 = vsel %vm65, %v62, %v63
    %v68 = vsel %vm65, %v61, %v62
    %v69 = vsel %vm65, %v60, %v61
    %v70 = vsel %vm65, %v59, %v60
    %v71 = vsel %vm65, %v64, %v59
    %v72 = vpack.c.bf16 %v70, %v71
    %v73 = vpack.c.bf16 %v68, %v69
    %v74 = vpack.c.bf16 %v66, %v67
    %v75 = vrot.slane %v53, 1
    %v76 = vrot.slane %v54, 1
    %v77 = vrot.slane %v55, 1
    %v78 = vrot.slane %v56, 1
    %v79 = vrot.slane %v57, 1
    %v80 = vrot.slane %v58, 1
    %vm81 = vcmp.lt.s32.totalorder %v35, 7
    %v82 = vsel %vm81, %v79, %v80
    %v83 = vsel %vm81, %v78, %v79
    %v84 = vsel %vm81, %v77, %v78
    %v85 = vsel %vm81, %v76, %v77
    %v86 = vsel %vm81, %v75, %v76
    %v87 = vsel %vm81, %v80, %v75
    %v88 = vpack.c.bf16 %v85, %v86
    %v89 = vpack.c.bf16 %v83, %v84
    %v90 = vpack.c.bf16 %v87, %v82
    %v97 = vunpack.c.l.b16 %v47
    %v98 = vunpack.c.l.b16 %v48
    %v99 = vunpack.c.l.b16 %v49
    %v100 = vunpack.c.l.b16 %v50
    %v101 = vunpack.c.l.b16 %v51
    %v102 = vunpack.c.l.b16 %v52
    %v103 = vpack.c.b16 %v98, %v97
    %v104 = vpack.c.b16 %v100, %v99
    %v105 = vpack.c.b16 %v102, %v101
    %106 = vrot.lane.b32.xlu0 %v103, 32
    %v107 = vpop.permute.xlu0 %106
    %108 = vrot.lane.b32.xlu0 %v104, 32
    %v109 = vpop.permute.xlu0 %108
    %110 = vrot.lane.b32.xlu0 %v105, 32
    %v111 = vpop.permute.xlu0 %110
    %115 = vrot.lane.b32.xlu0 %v88, 64
    %v116 = vpop.permute.xlu0 %115
    %117 = vrot.lane.b32.xlu0 %v89, 64
    %v118 = vpop.permute.xlu0 %117
    %119 = vrot.lane.b32.xlu0 %v90, 64
    %v120 = vpop.permute.xlu0 %119
    %vm121 = vcmask 261120
    %v124 = vsel %vm121, %v72, %v107
    %v127 = vsel %vm121, %v73, %v109
    %v130 = vsel %vm121, %v74, %v111
    %vm131 = vcmask 523264
    %v133 = vsel %vm131, %v124, %v116
    %v135 = vsel %vm131, %v127, %v118
    %v137 = vsel %vm131, %v130, %v120
    %v138 = vld [vmem:[%s2] sm:$0xf]
    %v139 = vld [vmem:[%s2 + $0x4] sm:$0xf]
    %v140 = vld [vmem:[%s2 + $0x8] sm:$0xf]
    %v141 = vld [vmem:[%s2 + $0xc] sm:$0xf]
    %v142 = vld [vmem:[%s2 + $0x10] sm:$0xf]
    %v143 = vld [vmem:[%s2 + $0x14] sm:$0xf]
    %v144 = vld [vmem:[%s2 + $0x18] sm:$0xf]
    %v145 = vld [vmem:[%s2 + $0x1c] sm:$0xf]
    %v146 = vld [vmem:[%s2 + $0x20] sm:$0xf]
    %v147 = vld [vmem:[%s2 + $0x24] sm:$0xf]
    %v148 = vld [vmem:[%s2 + $0x28] sm:$0xf]
    %v149 = vld [vmem:[%s2 + $0x2c] sm:$0xf]
    %v150 = vld [vmem:[%s3] sm:$0x1]
    %v152 = vlaneseq
    %v153 = vshrl.u32 %v152, 7
    %v154 = vsub.s32 0, %v153
    %v155 = vrot.slane %v150, %v154
    %v169 = vunpack.c.l.b16 %v138
    %v170 = vunpack.c.l.b16 %v139
    %v171 = vunpack.c.l.b16 %v140
    %v172 = vunpack.c.l.b16 %v141
    %v173 = vunpack.c.l.b16 %v142
    %v174 = vunpack.c.l.b16 %v143
    %v175 = vunpack.c.l.b16 %v144
    %v176 = vunpack.c.l.b16 %v145
    %v177 = vunpack.c.l.b16 %v146
    %v178 = vunpack.c.l.b16 %v147
    %v179 = vunpack.c.l.b16 %v148
    %v180 = vunpack.c.l.b16 %v149
    %v181 = vpack.c.b16 %v170, %v169
    %v182 = vpack.c.b16 %v172, %v171
    %v183 = vpack.c.b16 %v174, %v173
    %v184 = vpack.c.b16 %v176, %v175
    %v185 = vpack.c.b16 %v178, %v177
    %v186 = vpack.c.b16 %v180, %v179
    %vm193 = vcmask 785408
    %v194 = vsel %vm193, %v133, 0
    %v196 = vsel %vm193, %v135, 0
    %v198 = vsel %vm193, %v137, 0
    %200 = vmatprep.subr.bf16.mxu0 0
    %201 = vmatpush1.bf16.msra.mxu0 %v181
    %202 = vmatprep.subr.bf16.mxu0 0
    %203 = vmatpush1.bf16.msra.mxu0 %v182
    %204 = vmatprep.subr.bf16.mxu0 0
    %205 = vmatpush1.bf16.msra.mxu0 %v183
    %206 = vmatprep.subr.bf16.mxu0 0
    %207 = vmatpush1.bf16.msra.mxu0 %v184
    %208 = vmatprep.subr.bf16.mxu0 0
    %209 = vmatpush1.bf16.msra.mxu0 %v185
    %210 = vmatprep.subr.bf16.mxu0 0
    %211 = vmatpush1.bf16.msra.mxu0 %v186
    %212 = vmatprep.subr.bf16.mxu0 0
    %213 = vmatpush1.bf16.msra.mxu0 0
    %214 = vmatprep.subr.bf16.mxu0 0
    %215 = vmatpush1.bf16.msra.mxu0 0
    %216 = vmatprep.subr.bf16.mxu0 0
    %217 = vmatpush1.bf16.msra.mxu0 0
    %218 = vmatprep.subr.bf16.mxu0 0
    %219 = vmatpush1.bf16.msra.mxu0 0
    %220 = vmatprep.subr.bf16.mxu0 0
    %221 = vmatpush1.bf16.msra.mxu0 0
    %222 = vmatprep.subr.bf16.mxu0 0
    %223 = vmatpush1.bf16.msra.mxu0 0
    %224 = vmatprep.subr.bf16.mxu0 0
    %225 = vmatpush1.bf16.msra.mxu0 0
    %226 = vmatprep.subr.bf16.mxu0 0
    %227 = vmatpush1.bf16.msra.mxu0 0
    %228 = vmatprep.subr.bf16.mxu0 0
    %229 = vmatpush1.bf16.msra.mxu0 0
    %230 = vmatprep.subr.bf16.mxu0 0
    %231 = vmatpush1.bf16.msra.mxu0 0
    %232 = vmatprep.mubr.bf16.mxu0 0
    %233 = vmatmul.mubr.bf16.gmra.mrb[0].mxu0 %v194
    %v234 = vpop.f32.mrb[0].mxu0
    %v235 = vadd.f32 %v155, %v234
    %v236 = vpop.f32.mrb[0].mxu0
    %v237 = vpop.f32.mrb[0].mxu0
    %v238 = vadd.f32 %v155, %v237
    %v239 = vpop.f32.mrb[0].mxu0
    %240 = vmatprep.mubr.bf16.mxu0 0
    %241 = vmatmul.mubr.bf16.gmra.mrb[0].mxu0 %v196
    %v242 = vpop.f32.mrb[0].mxu0
    %v243 = vadd.f32 %v155, %v242
    %v244 = vpop.f32.mrb[0].mxu0
    %v245 = vpop.f32.mrb[0].mxu0
    %v246 = vadd.f32 %v155, %v245
    %v247 = vpop.f32.mrb[0].mxu0
    %248 = vmatprep.mubr.bf16.mxu0 0
    %249 = vmatmul.mubr.bf16.gmra.mrb[0].mxu0 %v198
    %v250 = vpop.f32.mrb[0].mxu0
    %v251 = vadd.f32 %v155, %v250
    %v252 = vpop.f32.mrb[0].mxu0
    %v253 = vpop.f32.mrb[0].mxu0
    %v254 = vadd.f32 %v155, %v253
    %v255 = vpop.f32.mrb[0].mxu0
    %256 = vdwg.mxu0
    %v257 = vmax.f32 %v235, 0.0
    %v258 = vmax.f32 %v238, 0.0
    %v259 = vmax.f32 %v243, 0.0
    %v260 = vmax.f32 %v246, 0.0
    %v261 = vmax.f32 %v251, 0.0
    %v262 = vmax.f32 %v254, 0.0
    %v263 = vsel %vm44, 1, 0
    %v264 = vsel %vm45, 1, 0
    %v265 = vsel %vm46, 1, 0
    %vm266 = vcmp.eq.s32.totalorder %v263, 1
    %vm267 = vcmp.eq.s32.totalorder %v264, 1
    %vm268 = vcmp.eq.s32.totalorder %v265, 1
    %v269 = vsel %vm266, %v257, 0.0
    %v270 = vsel %vm267, %v258, 0.0
    %v271 = vsel %vm268, %v259, 0.0
    %v272 = vsel %vm266, %v260, 0.0
    %v273 = vsel %vm267, %v261, 0.0
    %v274 = vsel %vm268, %v262, 0.0
    %v275 = vpack.c.bf16 %v270, %v269
    %v276 = vpack.c.bf16 %v272, %v271
    %v277 = vpack.c.bf16 %v274, %v273
    %v278 = vrot.slane %v269, 7
    %v279 = vrot.slane %v270, 7
    %v280 = vrot.slane %v271, 7
    %v281 = vrot.slane %v272, 7
    %v282 = vrot.slane %v273, 7
    %v283 = vrot.slane %v274, 7
    %v284 = vsel %vm65, %v282, %v283
    %v285 = vsel %vm65, %v281, %v282
    %v286 = vsel %vm65, %v280, %v281
    %v287 = vsel %vm65, %v279, %v280
    %v288 = vsel %vm65, %v278, %v279
    %v289 = vsel %vm65, %v283, %v278
    %v290 = vpack.c.bf16 %v288, %v289
    %v291 = vpack.c.bf16 %v286, %v287
    %v292 = vpack.c.bf16 %v284, %v285
    %v293 = vrot.slane %v269, 1
    %v294 = vrot.slane %v270, 1
    %v295 = vrot.slane %v271, 1
    %v296 = vrot.slane %v272, 1
    %v297 = vrot.slane %v273, 1
    %v298 = vrot.slane %v274, 1
    %v299 = vsel %vm81, %v297, %v298
    %v300 = vsel %vm81, %v296, %v297
    %v301 = vsel %vm81, %v295, %v296
    %v302 = vsel %vm81, %v294, %v295
    %v303 = vsel %vm81, %v293, %v294
    %v304 = vsel %vm81, %v298, %v293
    %v305 = vpack.c.bf16 %v302, %v303
    %v306 = vpack.c.bf16 %v300, %v301
    %v307 = vpack.c.bf16 %v304, %v299
    %v308 = vld [vmem:[%s4] sm:$0xf]
    %v309 = vld [vmem:[%s4 + $0x4] sm:$0xf]
    %v310 = vld [vmem:[%s4 + $0x8] sm:$0xf]
    %v311 = vld [vmem:[%s4 + $0xc] sm:$0xf]
    %v312 = vld [vmem:[%s4 + $0x10] sm:$0xf]
    %v313 = vld [vmem:[%s4 + $0x14] sm:$0xf]
    %v314 = vld [vmem:[%s4 + $0x18] sm:$0xf]
    %v315 = vld [vmem:[%s4 + $0x1c] sm:$0xf]
    %v316 = vld [vmem:[%s4 + $0x20] sm:$0xf]
    %v317 = vld [vmem:[%s4 + $0x24] sm:$0xf]
    %v318 = vld [vmem:[%s4 + $0x28] sm:$0xf]
    %v319 = vld [vmem:[%s4 + $0x2c] sm:$0xf]
    %v320 = vld [vmem:[%s4 + $0x30] sm:$0xf]
    %v321 = vld [vmem:[%s4 + $0x34] sm:$0xf]
    %v322 = vld [vmem:[%s4 + $0x38] sm:$0xf]
    %v323 = vld [vmem:[%s4 + $0x3c] sm:$0xf]
    %v324 = vld [vmem:[%s4 + $0x40] sm:$0xf]
    %v325 = vld [vmem:[%s4 + $0x44] sm:$0xf]
    %v326 = vld [vmem:[%s4 + $0x48] sm:$0xf]
    %v327 = vld [vmem:[%s4 + $0x4c] sm:$0xf]
    %v328 = vld [vmem:[%s4 + $0x50] sm:$0xf]
    %v329 = vld [vmem:[%s4 + $0x54] sm:$0xf]
    %v330 = vld [vmem:[%s4 + $0x58] sm:$0xf]
    %v331 = vld [vmem:[%s4 + $0x5c] sm:$0xf]
    %v332 = vld [vmem:[%s4 + $0x60] sm:$0xf]
    %v333 = vld [vmem:[%s4 + $0x64] sm:$0xf]
    %v334 = vld [vmem:[%s4 + $0x68] sm:$0xf]
    %v335 = vld [vmem:[%s4 + $0x6c] sm:$0xf]
    %v336 = vld [vmem:[%s4 + $0x70] sm:$0xf]
    %v337 = vld [vmem:[%s4 + $0x74] sm:$0xf]
    %v338 = vld [vmem:[%s4 + $0x78] sm:$0xf]
    %v339 = vld [vmem:[%s4 + $0x7c] sm:$0xf]
    %v340 = vld [vmem:[%s4 + $0x80] sm:$0xf]
    %v341 = vld [vmem:[%s4 + $0x84] sm:$0xf]
    %v342 = vld [vmem:[%s4 + $0x88] sm:$0xf]
    %v343 = vld [vmem:[%s4 + $0x8c] sm:$0xf]
    %v344 = vld [vmem:[%s4 + $0x90] sm:$0xf]
    %v345 = vld [vmem:[%s4 + $0x94] sm:$0xf]
    %v346 = vld [vmem:[%s4 + $0x98] sm:$0xf]
    %v347 = vld [vmem:[%s4 + $0x9c] sm:$0xf]
    %v348 = vld [vmem:[%s4 + $0xa0] sm:$0xf]
    %v349 = vld [vmem:[%s4 + $0xa4] sm:$0xf]
    %v350 = vld [vmem:[%s4 + $0xa8] sm:$0xf]
    %v351 = vld [vmem:[%s4 + $0xac] sm:$0xf]
    %v352 = vld [vmem:[%s4 + $0xb0] sm:$0xf]
    %v353 = vld [vmem:[%s4 + $0xb4] sm:$0xf]
    %v354 = vld [vmem:[%s4 + $0xb8] sm:$0xf]
    %v355 = vld [vmem:[%s4 + $0xbc] sm:$0xf]
    %v356 = vld [vmem:[%s5] sm:$0x1]
    %v358 = vlaneseq
    %v359 = vshrl.u32 %v358, 7
    %v360 = vsub.s32 0, %v359
    %v361 = vrot.slane %v356, %v360
    %v411 = vunpack.c.l.b16 %v308
    %v412 = vunpack.c.l.b16 %v309
    %v413 = vunpack.c.l.b16 %v310
    %v414 = vunpack.c.l.b16 %v311
    %v415 = vunpack.c.l.b16 %v312
    %v416 = vunpack.c.l.b16 %v313
    %v417 = vunpack.c.l.b16 %v314
    %v418 = vunpack.c.l.b16 %v315
    %v419 = vunpack.c.l.b16 %v316
    %v420 = vunpack.c.l.b16 %v317
    %v421 = vunpack.c.l.b16 %v318
    %v422 = vunpack.c.l.b16 %v319
    %v423 = vunpack.c.l.b16 %v320
    %v424 = vunpack.c.l.b16 %v321
    %v425 = vunpack.c.l.b16 %v322
    %v426 = vunpack.c.l.b16 %v323
    %v427 = vunpack.c.l.b16 %v324
    %v428 = vunpack.c.l.b16 %v325
    %v429 = vunpack.c.l.b16 %v326
    %v430 = vunpack.c.l.b16 %v327
    %v431 = vunpack.c.l.b16 %v328
    %v432 = vunpack.c.l.b16 %v329
    %v433 = vunpack.c.l.b16 %v330
    %v434 = vunpack.c.l.b16 %v331
    %v435 = vunpack.c.l.b16 %v332
    %v436 = vunpack.c.l.b16 %v333
    %v437 = vunpack.c.l.b16 %v334
    %v438 = vunpack.c.l.b16 %v335
    %v439 = vunpack.c.l.b16 %v336
    %v440 = vunpack.c.l.b16 %v337
    %v441 = vunpack.c.l.b16 %v338
    %v442 = vunpack.c.l.b16 %v339
    %v443 = vunpack.c.l.b16 %v340
    %v444 = vunpack.c.l.b16 %v341
    %v445 = vunpack.c.l.b16 %v342
    %v446 = vunpack.c.l.b16 %v343
    %v447 = vunpack.c.l.b16 %v344
    %v448 = vunpack.c.l.b16 %v345
    %v449 = vunpack.c.l.b16 %v346
    %v450 = vunpack.c.l.b16 %v347
    %v451 = vunpack.c.l.b16 %v348
    %v452 = vunpack.c.l.b16 %v349
    %v453 = vunpack.c.l.b16 %v350
    %v454 = vunpack.c.l.b16 %v351
    %v455 = vunpack.c.l.b16 %v352
    %v456 = vunpack.c.l.b16 %v353
    %v457 = vunpack.c.l.b16 %v354
    %v458 = vunpack.c.l.b16 %v355
    %v459 = vpack.c.b16 %v412, %v411
    %v460 = vpack.c.b16 %v414, %v413
    %v461 = vpack.c.b16 %v416, %v415
    %v462 = vpack.c.b16 %v418, %v417
    %v463 = vpack.c.b16 %v420, %v419
    %v464 = vpack.c.b16 %v422, %v421
    %v465 = vpack.c.b16 %v424, %v423
    %v466 = vpack.c.b16 %v426, %v425
    %v467 = vpack.c.b16 %v428, %v427
    %v468 = vpack.c.b16 %v430, %v429
    %v469 = vpack.c.b16 %v432, %v431
    %v470 = vpack.c.b16 %v434, %v433
    %v471 = vpack.c.b16 %v436, %v435
    %v472 = vpack.c.b16 %v438, %v437
    %v473 = vpack.c.b16 %v440, %v439
    %v474 = vpack.c.b16 %v442, %v441
    %v475 = vpack.c.b16 %v444, %v443
    %v476 = vpack.c.b16 %v446, %v445
    %v477 = vpack.c.b16 %v448, %v447
    %v478 = vpack.c.b16 %v450, %v449
    %v479 = vpack.c.b16 %v452, %v451
    %v480 = vpack.c.b16 %v454, %v453
    %v481 = vpack.c.b16 %v456, %v455
    %v482 = vpack.c.b16 %v458, %v457
    %507 = vmatprep.subr.bf16.mxu0 0
    %508 = vmatpush1.bf16.msra.mxu0 %v459
    %509 = vmatprep.subr.bf16.mxu0 0
    %510 = vmatpush1.bf16.msra.mxu0 %v460
    %511 = vmatprep.subr.bf16.mxu0 0
    %512 = vmatpush1.bf16.msra.mxu0 %v461
    %513 = vmatprep.subr.bf16.mxu0 0
    %514 = vmatpush1.bf16.msra.mxu0 %v462
    %515 = vmatprep.subr.bf16.mxu0 0
    %516 = vmatpush1.bf16.msra.mxu0 %v463
    %517 = vmatprep.subr.bf16.mxu0 0
    %518 = vmatpush1.bf16.msra.mxu0 %v464
    %519 = vmatprep.subr.bf16.mxu0 0
    %520 = vmatpush1.bf16.msra.mxu0 %v465
    %521 = vmatprep.subr.bf16.mxu0 0
    %522 = vmatpush1.bf16.msra.mxu0 %v466
    %523 = vmatprep.subr.bf16.mxu0 0
    %524 = vmatpush1.bf16.msra.mxu0 %v467
    %525 = vmatprep.subr.bf16.mxu0 0
    %526 = vmatpush1.bf16.msra.mxu0 %v468
    %527 = vmatprep.subr.bf16.mxu0 0
    %528 = vmatpush1.bf16.msra.mxu0 %v469
    %529 = vmatprep.subr.bf16.mxu0 0
    %530 = vmatpush1.bf16.msra.mxu0 %v470
    %531 = vmatprep.subr.bf16.mxu0 0
    %532 = vmatpush1.bf16.msra.mxu0 %v471
    %533 = vmatprep.subr.bf16.mxu0 0
    %534 = vmatpush1.bf16.msra.mxu0 %v472
    %535 = vmatprep.subr.bf16.mxu0 0
    %536 = vmatpush1.bf16.msra.mxu0 %v473
    %537 = vmatprep.subr.bf16.mxu0 0
    %538 = vmatpush1.bf16.msra.mxu0 %v474
    %539 = vmatprep.mubr.bf16.mxu0 %v275
    %540 = vmatmul.mubr.bf16.gmra.mrb[0].mxu0 %v290
    %v541 = vpop.f32.mrb[0].mxu0
    %v542 = vadd.f32 %v361, %v541
    %v543 = vpop.f32.mrb[0].mxu0
    %v544 = vpop.f32.mrb[0].mxu0
    %v545 = vadd.f32 %v361, %v544
    %v546 = vpop.f32.mrb[0].mxu0
    %547 = vmatprep.mubr.bf16.mxu0 %v276
    %548 = vmatmul.mubr.bf16.gmra.mrb[0].mxu0 %v291
    %v549 = vpop.f32.mrb[0].mxu0
    %v550 = vadd.f32 %v361, %v549
    %v551 = vpop.f32.mrb[0].mxu0
    %v552 = vpop.f32.mrb[0].mxu0
    %v553 = vadd.f32 %v361, %v552
    %v554 = vpop.f32.mrb[0].mxu0
    %555 = vmatprep.mubr.bf16.mxu0 %v277
    %556 = vmatmul.mubr.bf16.gmra.mrb[0].mxu0 %v292
    %v557 = vpop.f32.mrb[0].mxu0
    %v558 = vadd.f32 %v361, %v557
    %v559 = vpop.f32.mrb[0].mxu0
    %v560 = vpop.f32.mrb[0].mxu0
    %v561 = vadd.f32 %v361, %v560
    %v562 = vpop.f32.mrb[0].mxu0
    %563 = vdwg.mxu0
    %564 = vmatprep.subr.bf16.mxu0 0
    %565 = vmatpush1.bf16.msra.mxu0 %v475
    %566 = vmatprep.subr.bf16.mxu0 0
    %567 = vmatpush1.bf16.msra.mxu0 %v476
    %568 = vmatprep.subr.bf16.mxu0 0
    %569 = vmatpush1.bf16.msra.mxu0 %v477
    %570 = vmatprep.subr.bf16.mxu0 0
    %571 = vmatpush1.bf16.msra.mxu0 %v478
    %572 = vmatprep.subr.bf16.mxu0 0
    %573 = vmatpush1.bf16.msra.mxu0 %v479
    %574 = vmatprep.subr.bf16.mxu0 0
    %575 = vmatpush1.bf16.msra.mxu0 %v480
    %576 = vmatprep.subr.bf16.mxu0 0
    %577 = vmatpush1.bf16.msra.mxu0 %v481
    %578 = vmatprep.subr.bf16.mxu0 0
    %579 = vmatpush1.bf16.msra.mxu0 %v482
    %580 = vmatprep.subr.bf16.mxu0 0
    %581 = vmatpush1.bf16.msra.mxu0 0
    %582 = vmatprep.subr.bf16.mxu0 0
    %583 = vmatpush1.bf16.msra.mxu0 0
    %584 = vmatprep.subr.bf16.mxu0 0
    %585 = vmatpush1.bf16.msra.mxu0 0
    %586 = vmatprep.subr.bf16.mxu0 0
    %587 = vmatpush1.bf16.msra.mxu0 0
    %588 = vmatprep.subr.bf16.mxu0 0
    %589 = vmatpush1.bf16.msra.mxu0 0
    %590 = vmatprep.subr.bf16.mxu0 0
    %591 = vmatpush1.bf16.msra.mxu0 0
    %592 = vmatprep.subr.bf16.mxu0 0
    %593 = vmatpush1.bf16.msra.mxu0 0
    %594 = vmatprep.subr.bf16.mxu0 0
    %595 = vmatpush1.bf16.msra.mxu0 0
    %596 = vmatprep.mubr.bf16.mxu0 0
    %597 = vmatmul.mubr.bf16.gmra.mrb[0].mxu0 %v305
    %v598 = vpop.f32.mrb[0].mxu0
    %v599 = vadd.f32 %v542, %v598
    %v600 = vpop.f32.mrb[0].mxu0
    %v601 = vpop.f32.mrb[0].mxu0
    %v602 = vadd.f32 %v545, %v601
    %v603 = vpop.f32.mrb[0].mxu0
    %604 = vmatprep.mubr.bf16.mxu0 0
    %605 = vmatmul.mubr.bf16.gmra.mrb[0].mxu0 %v306
    %v606 = vpop.f32.mrb[0].mxu0
    %v607 = vadd.f32 %v550, %v606
    %v608 = vpop.f32.mrb[0].mxu0
    %v609 = vpop.f32.mrb[0].mxu0
    %v610 = vadd.f32 %v553, %v609
    %v611 = vpop.f32.mrb[0].mxu0
    %612 = vmatprep.mubr.bf16.mxu0 0
    %613 = vmatmul.mubr.bf16.gmra.mrb[0].mxu0 %v307
    %v614 = vpop.f32.mrb[0].mxu0
    %v615 = vadd.f32 %v558, %v614
    %v616 = vpop.f32.mrb[0].mxu0
    %v617 = vpop.f32.mrb[0].mxu0
    %v618 = vadd.f32 %v561, %v617
    %v619 = vpop.f32.mrb[0].mxu0
    %620 = vdwg.mxu0
    %v621 = vmax.f32 %v599, 0.0
    %v622 = vmax.f32 %v602, 0.0
    %v623 = vmax.f32 %v607, 0.0
    %v624 = vmax.f32 %v610, 0.0
    %v625 = vmax.f32 %v615, 0.0
    %v626 = vmax.f32 %v618, 0.0
    %v627 = vsel %vm266, %v621, 0.0
    %v628 = vsel %vm267, %v622, 0.0
    %v629 = vsel %vm268, %v623, 0.0
    %v630 = vsel %vm266, %v624, 0.0
    %v631 = vsel %vm267, %v625, 0.0
    %v632 = vsel %vm268, %v626, 0.0
    %v633 = vsel %vm131, %v627, 0.0
    %v634 = vsel %vm131, %v628, 0.0
    %v635 = vadd.f32 %v633, %v634
    %v636 = vsel %vm131, %v629, 0.0
    %v637 = vadd.f32 %v635, %v636
    %v638 = vrot.slane %v637, 4
    %v639 = vadd.f32 %v637, %v638
    %v640 = vrot.slane %v639, 2
    %v641 = vadd.f32 %v639, %v640
    %v642 = vrot.slane %v641, 1
    %v643 = vadd.f32 %v641, %v642
    %v644 = vsel %vm131, %v630, 0.0
    %v645 = vsel %vm131, %v631, 0.0
    %v646 = vadd.f32 %v644, %v645
    %v647 = vsel %vm131, %v632, 0.0
    %v648 = vadd.f32 %v646, %v647
    %v649 = vrot.slane %v648, 4
    %v650 = vadd.f32 %v648, %v649
    %v651 = vrot.slane %v650, 2
    %v652 = vadd.f32 %v650, %v651
    %v653 = vrot.slane %v652, 1
    %v654 = vadd.f32 %v652, %v653
    %v655 = vmul.f32 %v643, 0.0625
    %v656 = vmul.f32 %v654, 0.0625
    %v657 = vld [vmem:[%s6] sm:$0xff]
    %v658 = vld [vmem:[%s6 + $0x8] sm:$0xff]
    %v659 = vld [vmem:[%s6 + $0x10] sm:$0xff]
    %v660 = vld [vmem:[%s6 + $0x18] sm:$0xff]
    %v661 = vld [vmem:[%s6 + $0x20] sm:$0xff]
    %v662 = vld [vmem:[%s6 + $0x28] sm:$0xff]
    %v663 = vld [vmem:[%s6 + $0x30] sm:$0xff]
    %v664 = vld [vmem:[%s6 + $0x38] sm:$0xff]
    %v665 = vld [vmem:[%s1] sm:$0x3]
    %v666 = vld [vmem:[%s7] sm:$0xff]
    %vm667 = vcmask 64512
    %v669 = vsel %vm667, %v665, 0
    %671 = vmatprep.subr.mxu0 0.0
    %672 = vmatpush1.msra.mxu0 %v666
    %673 = vmatprep.subr.mxu0 0.0
    %674 = vmatpush1.msra.mxu0 0.0
    %675 = vmatprep.subr.mxu0 0.0
    %676 = vmatpush1.msra.mxu0 0.0
    %677 = vmatprep.subr.mxu0 0.0
    %678 = vmatpush1.msra.mxu0 0.0
    %679 = vmatprep.subr.mxu0 0.0
    %680 = vmatpush1.msra.mxu0 0.0
    %681 = vmatprep.subr.mxu0 0.0
    %682 = vmatpush1.msra.mxu0 0.0
    %683 = vmatprep.subr.mxu0 0.0
    %684 = vmatpush1.msra.mxu0 0.0
    %685 = vmatprep.subr.mxu0 0.0
    %686 = vmatpush1.msra.mxu0 0.0
    %687 = vmatprep.subr.mxu0 0.0
    %688 = vmatpush1.msra.mxu0 0.0
    %689 = vmatprep.subr.mxu0 0.0
    %690 = vmatpush1.msra.mxu0 0.0
    %691 = vmatprep.subr.mxu0 0.0
    %692 = vmatpush1.msra.mxu0 0.0
    %693 = vmatprep.subr.mxu0 0.0
    %694 = vmatpush1.msra.mxu0 0.0
    %695 = vmatprep.subr.mxu0 0.0
    %696 = vmatpush1.msra.mxu0 0.0
    %697 = vmatprep.subr.mxu0 0.0
    %698 = vmatpush1.msra.mxu0 0.0
    %699 = vmatprep.subr.mxu0 0.0
    %700 = vmatpush1.msra.mxu0 0.0
    %701 = vmatprep.subr.mxu0 0.0
    %702 = vmatpush1.msra.mxu0 0.0
    %703 = vmatprep.subr.mxu0 0.0
    %704 = vmatpush1.msra.mxu0 0.0
    %705 = vmatprep.subr.mxu0 0.0
    %706 = vmatpush1.msra.mxu0 0.0
    %707 = vmatprep.subr.mxu0 0.0
    %708 = vmatpush1.msra.mxu0 0.0
    %709 = vmatprep.subr.mxu0 0.0
    %710 = vmatpush1.msra.mxu0 0.0
    %711 = vmatprep.subr.mxu0 0.0
    %712 = vmatpush1.msra.mxu0 0.0
    %713 = vmatprep.subr.mxu0 0.0
    %714 = vmatpush1.msra.mxu0 0.0
    %715 = vmatprep.subr.mxu0 0.0
    %716 = vmatpush1.msra.mxu0 0.0
    %717 = vmatprep.subr.mxu0 0.0
    %718 = vmatpush1.msra.mxu0 0.0
    %719 = vmatprep.subr.mxu0 0.0
    %720 = vmatpush1.msra.mxu0 0.0
    %721 = vmatprep.subr.mxu0 0.0
    %722 = vmatpush1.msra.mxu0 0.0
    %723 = vmatprep.subr.mxu0 0.0
    %724 = vmatpush1.msra.mxu0 0.0
    %725 = vmatprep.subr.mxu0 0.0
    %726 = vmatpush1.msra.mxu0 0.0
    %727 = vmatprep.subr.mxu0 0.0
    %728 = vmatpush1.msra.mxu0 0.0
    %729 = vmatprep.subr.mxu0 0.0
    %730 = vmatpush1.msra.mxu0 0.0
    %731 = vmatprep.subr.mxu0 0.0
    %732 = vmatpush1.msra.mxu0 0.0
    %733 = vmatprep.subr.mxu0 0.0
    %734 = vmatpush1.msra.mxu0 0.0
    %735 = vmatprep.mubr.f32.mxu0 0.0
    %736 = vmatmul.mubr.f32.gmra.mrb[0].mxu0 %v669
    %v737 = vpop.f32.mrb[0].mxu0
    %v738 = vadd.f32 0.0, %v737
    %v739 = vpop.f32.mrb[0].mxu0
    %740 = vdwg.mxu0
    %vm743 = vcmask 1041409
    %v744 = vsel %vm743, %v656, %v655
    %v745 = vsel %vm131, %v744, 0
    %747 = vmatprep.subr.mxu0 0.0
    %748 = vmatpush1.msra.mxu0 %v657
    %749 = vmatprep.subr.mxu0 0.0
    %750 = vmatpush1.msra.mxu0 %v658
    %751 = vmatprep.subr.mxu0 0.0
    %752 = vmatpush1.msra.mxu0 %v659
    %753 = vmatprep.subr.mxu0 0.0
    %754 = vmatpush1.msra.mxu0 %v660
    %755 = vmatprep.subr.mxu0 0.0
    %756 = vmatpush1.msra.mxu0 %v661
    %757 = vmatprep.subr.mxu0 0.0
    %758 = vmatpush1.msra.mxu0 %v662
    %759 = vmatprep.subr.mxu0 0.0
    %760 = vmatpush1.msra.mxu0 %v663
    %761 = vmatprep.subr.mxu0 0.0
    %762 = vmatpush1.msra.mxu0 %v664
    %763 = vmatprep.subr.mxu0 0.0
    %764 = vmatpush1.msra.mxu0 0.0
    %765 = vmatprep.subr.mxu0 0.0
    %766 = vmatpush1.msra.mxu0 0.0
    %767 = vmatprep.subr.mxu0 0.0
    %768 = vmatpush1.msra.mxu0 0.0
    %769 = vmatprep.subr.mxu0 0.0
    %770 = vmatpush1.msra.mxu0 0.0
    %771 = vmatprep.subr.mxu0 0.0
    %772 = vmatpush1.msra.mxu0 0.0
    %773 = vmatprep.subr.mxu0 0.0
    %774 = vmatpush1.msra.mxu0 0.0
    %775 = vmatprep.subr.mxu0 0.0
    %776 = vmatpush1.msra.mxu0 0.0
    %777 = vmatprep.subr.mxu0 0.0
    %778 = vmatpush1.msra.mxu0 0.0
    %779 = vmatprep.subr.mxu0 0.0
    %780 = vmatpush1.msra.mxu0 0.0
    %781 = vmatprep.subr.mxu0 0.0
    %782 = vmatpush1.msra.mxu0 0.0
    %783 = vmatprep.subr.mxu0 0.0
    %784 = vmatpush1.msra.mxu0 0.0
    %785 = vmatprep.subr.mxu0 0.0
    %786 = vmatpush1.msra.mxu0 0.0
    %787 = vmatprep.subr.mxu0 0.0
    %788 = vmatpush1.msra.mxu0 0.0
    %789 = vmatprep.subr.mxu0 0.0
    %790 = vmatpush1.msra.mxu0 0.0
    %791 = vmatprep.subr.mxu0 0.0
    %792 = vmatpush1.msra.mxu0 0.0
    %793 = vmatprep.subr.mxu0 0.0
    %794 = vmatpush1.msra.mxu0 0.0
    %795 = vmatprep.subr.mxu0 0.0
    %796 = vmatpush1.msra.mxu0 0.0
    %797 = vmatprep.subr.mxu0 0.0
    %798 = vmatpush1.msra.mxu0 0.0
    %799 = vmatprep.subr.mxu0 0.0
    %800 = vmatpush1.msra.mxu0 0.0
    %801 = vmatprep.subr.mxu0 0.0
    %802 = vmatpush1.msra.mxu0 0.0
    %803 = vmatprep.subr.mxu0 0.0
    %804 = vmatpush1.msra.mxu0 0.0
    %805 = vmatprep.subr.mxu0 0.0
    %806 = vmatpush1.msra.mxu0 0.0
    %807 = vmatprep.subr.mxu0 0.0
    %808 = vmatpush1.msra.mxu0 0.0
    %809 = vmatprep.subr.mxu0 0.0
    %810 = vmatpush1.msra.mxu0 0.0
    %811 = vmatprep.mubr.f32.mxu0 0.0
    %812 = vmatmul.mubr.f32.gmra.mrb[0].mxu0 %v745
    %v813 = vpop.f32.mrb[0].mxu0
    %v814 = vadd.f32 %v738, %v813
    %v815 = vpop.f32.mrb[0].mxu0
    %816 = vdwg.mxu0
    %v817 = vld [vmem:[%s8] sm:$0x1]
    %v819 = vlaneseq
    %v820 = vshrl.u32 %v819, 7
    %v821 = vsub.s32 0, %v820
    %v822 = vrot.slane %v817, %v821
    %v824 = vadd.f32 %v814, %v822
    %825 = vst [vmem:[#allocation2] sm:$0x3] %v824
    // Predicated region
    $region38: #{tpu_custom_call.1} parent=1 // pred_check
      _
    $region39: #{tpu_custom_call.1} parent=1 // pred_check_branch
      %827 = sbr.rel (0) target = $region41
    $region40: #{tpu_custom_call.1} parent=1 // pred_region
      %s829 = ssub.s32 32, 32
      %830 = vsyncadd [#allocation3], %s829
      %s832 = sshll.u32 [#allocation2], 4
      %s833 = int_to_ptr.vmem [resolvable:$true] %s832
      %835 = dma.vmem_to_hbm [thread:$0]  %s833, 32, %s9, [#allocation3]
    $region41: #{tpu_custom_call.1} parent=1 // pred_fallthru
      _
    // Predicated region
    $region42: #{tpu_custom_call.1} parent=1 // pred_check
      _
    $region43: #{tpu_custom_call.1} parent=1 // pred_check_branch
      %837 = sbr.rel (0) target = $region45
    $region44: #{tpu_custom_call.1} parent=1 // pred_region
      %838 = dma.done [#allocation3], 32
    $region45: #{tpu_custom_call.1} parent=1 // pred_fallthru
      _
    %839 = vsyncpa [#allocation3], 1

</llo_original>
